<compile_context>
chip_gen: v6e
topology: v6e:2x2x1
jax: 0.10.0
libtpu: 0.0.40
codegen_flags: <defaults>
</compile_context>

<pallas_src>
import jax
import jax.numpy as jnp
from jax.experimental import pallas as pl
from jax.experimental.pallas import tpu as pltpu


def _head_kernel(x_ref, w1_ref, b1_ref, w2_ref, b2_ref, o_ref, acc_ref):
    # x_ref : [tb, tk]   CLS slab, K-slice (native dtype)
    # w1_ref: [tk, H]    dense weight K-slice (native dtype)
    # b1_ref: [1, H]     dense bias (resident)
    # w2_ref: [H, Lp]    out_proj weight, labels lane-padded (resident)
    # b2_ref: [1, Lp]    out_proj bias, lane-padded (resident)
    # o_ref : [tb, Lp]   logits block (lane-padded)
    # acc_ref: [tb, H]   f32 accumulator scratch (persists across K steps)
    k = pl.program_id(1)

    @pl.when(k == 0)
    def _init():
        acc_ref[...] = jnp.zeros_like(acc_ref)

    # Partial product for the dense layer: native-dtype operands on the MXU,
    # f32 accumulation.
    acc_ref[...] += jnp.dot(x_ref[...], w1_ref[...],
                            preferred_element_type=jnp.float32)

    @pl.when(k == pl.num_programs(1) - 1)
    def _finalize():
        # Bias + tanh + out_proj in f32 (EUP tanh; v5e-safe, no bf16 VPU ops).
        h = jnp.tanh(acc_ref[...] + b1_ref[...].astype(jnp.float32))
        out = jnp.dot(h, w2_ref[...], preferred_element_type=jnp.float32)
        out = out + b2_ref[...].astype(jnp.float32)
        o_ref[...] = out.astype(o_ref.dtype)


def _pick_k_tile(hidden):
    """K tile for the dense matmul: ~512, divisor of H, 128-aligned."""
    for tk in (512, 1024, 256, 128):
        if hidden % tk == 0:
            return tk
    return hidden  # small / odd hidden sizes: single full-extent block


def _pick_b_tile(batch):
    """Batch tile: only split when batch is big enough to feed 2 TCs."""
    for tb in (512, 256, 128):
        if batch > tb and batch % tb == 0:
            return tb
    return batch   # full-extent block (always legal, even if < 8 sublanes)


def esm_seq_cls_linear_head(features, w_dense, b_dense, w_out, b_out,
                            out_dtype=None):
    """features: [B, S, H]; weights stored [in, out]; returns logits [B, L].

    Weights/features may be bf16: they are consumed natively by the MXU with
    f32 accumulation (no in-kernel up-cast of the big dense weight).
    """
    B, S, H = features.shape
    L = w_out.shape[1]
    out_dtype = features.dtype if out_dtype is None else out_dtype

    # CLS token (cheap [B, H] slab vs. the H*H weight stream).
    x_cls = features[:, 0, :]

    # Lane-dense label padding (multiple of 128); sliced back after the call.
    Lp = ((L + 127) // 128) * 128
    if Lp != L:
        w_out = jnp.pad(w_out, ((0, 0), (0, Lp - L)))
        b_out = jnp.pad(b_out, ((0, Lp - L),))
    b1 = b_dense.reshape(1, H)
    b2 = b_out.reshape(1, Lp)

    tk = _pick_k_tile(H)
    tb = _pick_b_tile(B)
    nb, nk = B // tb, H // tk

    itemsize = lambda a: jnp.dtype(a.dtype).itemsize
    cost = pl.CostEstimate(
        flops=int(2 * B * H * (H + Lp)),
        transcendentals=int(B * H),
        bytes_accessed=int(x_cls.size * itemsize(x_cls)
                           + w_dense.size * itemsize(w_dense)
                           + b1.size * itemsize(b1)
                           + w_out.size * itemsize(w_out)
                           + b2.size * itemsize(b2)
                           + B * Lp * jnp.dtype(out_dtype).itemsize),
    )

    logits = pl.pallas_call(
        _head_kernel,
        out_shape=jax.ShapeDtypeStruct((B, Lp), out_dtype),
        grid=(nb, nk),
        in_specs=[
            pl.BlockSpec((tb, tk), lambda i, k: (i, k)),   # x_cls K-slice
            pl.BlockSpec((tk, H), lambda i, k: (k, 0)),    # w_dense K-slice
            pl.BlockSpec((1, H), lambda i, k: (0, 0)),     # b_dense (resident)
            pl.BlockSpec((H, Lp), lambda i, k: (0, 0)),    # w_out (resident)
            pl.BlockSpec((1, Lp), lambda i, k: (0, 0)),    # b_out (resident)
        ],
        out_specs=pl.BlockSpec((tb, Lp), lambda i, k: (i, 0)),
        scratch_shapes=[pltpu.VMEM((tb, H), jnp.float32)],
        compiler_params=pltpu.CompilerParams(
            dimension_semantics=("parallel", "arbitrary")),
        cost_estimate=cost,
    )(x_cls, w_dense, b1, w_out, b2)

    return logits[:, :L] if Lp != L else logits


def _init_linear(key, fan_in, fan_out, dtype=jnp.float32):
    """Deterministic nn.Linear-style init: U(-1/sqrt(fan_in), 1/sqrt(fan_in))."""
    kw, kb = jax.random.split(key)
    bound = 1.0 / (fan_in ** 0.5)
    w = jax.random.uniform(kw, (fan_in, fan_out), dtype, -bound, bound)
    b = jax.random.uniform(kb, (fan_out,), dtype, -bound, bound)
    return w, b


def _reference(features, w_dense, b_dense, w_out, b_out):
    x = features[:, 0, :].astype(jnp.float32)
    x = jnp.tanh(x @ w_dense.astype(jnp.float32) + b_dense.astype(jnp.float32))
    out = x @ w_out.astype(jnp.float32) + b_out.astype(jnp.float32)
    return out.astype(features.dtype)


if __name__ == "__main__":
    # Small config: batch=8, seq=8, hidden=32, num_labels=4
    B, S, H, L = 8, 8, 32, 4
    key = jax.random.PRNGKey(0)
    k_feat, k_dense, k_out = jax.random.split(key, 3)

    features = jax.random.normal(k_feat, (B, S, H), dtype=jnp.float32)
    w_dense, b_dense = _init_linear(k_dense, H, H)
    w_out, b_out = _init_linear(k_out, H, L)

    # f32 path: exact check against the reference.
    logits = esm_seq_cls_linear_head(features, w_dense, b_dense, w_out, b_out)
    logits = jax.block_until_ready(logits)
    ref = _reference(features, w_dense, b_dense, w_out, b_out)
    assert logits.shape == (B, L), logits.shape
    assert jnp.allclose(logits, ref, atol=1e-5, rtol=1e-5), "f32 mismatch"

    # bf16 path: weights/activations stream natively into the MXU (no
    # in-kernel up-cast); f32 accumulation keeps the numerics tight.
    bf = jnp.bfloat16
    logits_bf = esm_seq_cls_linear_head(
        features.astype(bf), w_dense.astype(bf), b_dense.astype(bf),
        w_out.astype(bf), b_out.astype(bf))
    logits_bf = jax.block_until_ready(logits_bf)
    ref_bf = _reference(features.astype(bf), w_dense.astype(bf),
                        b_dense.astype(bf), w_out.astype(bf), b_out.astype(bf))
    assert logits_bf.shape == (B, L), logits_bf.shape
    assert jnp.allclose(logits_bf.astype(jnp.float32),
                        ref_bf.astype(jnp.float32),
                        atol=5e-2, rtol=5e-2), "bf16 mismatch"

    print("KERNEL_OK")
</pallas_src>

<mosaic_0001>
module attributes {stable_mosaic.version = 11 : i64} {
  func.func @_head_kernel(%arg0: i32, %arg1: i32, %arg2: memref<8x32xf32, #tpu.memory_space<vmem>>, %arg3: memref<32x32xf32, #tpu.memory_space<vmem>>, %arg4: memref<1x32xf32, #tpu.memory_space<vmem>>, %arg5: memref<32x128xf32, #tpu.memory_space<vmem>>, %arg6: memref<1x128xf32, #tpu.memory_space<vmem>>, %arg7: memref<8x128xf32, #tpu.memory_space<vmem>>, %arg8: memref<8x32xf32, #tpu.memory_space<vmem>>) attributes {dimension_semantics = [#tpu.dimension_semantics<parallel>, #tpu.dimension_semantics<arbitrary>], iteration_bounds = array<i64: 1, 1>, scalar_prefetch = 0 : i64, scratch_operands = 1 : i64, tpu.core_type = #tpu.core_type<tc>, window_params = [{transform_indices = @transform_0, window_bounds = array<i64: 8, 32>}, {transform_indices = @transform_1, window_bounds = array<i64: 32, 32>}, {pipeline_mode = #tpu.pipeline_mode<synchronous>, transform_indices = @transform_2, window_bounds = array<i64: 1, 32>}, {pipeline_mode = #tpu.pipeline_mode<synchronous>, transform_indices = @transform_3, window_bounds = array<i64: 32, 128>}, {pipeline_mode = #tpu.pipeline_mode<synchronous>, transform_indices = @transform_4, window_bounds = array<i64: 1, 128>}, {transform_indices = @transform_5, window_bounds = array<i64: 8, 128>}]} {
    %c0_i32 = arith.constant 0 : i32
    %0 = arith.cmpi eq, %arg1, %c0_i32 : i32
    %1 = arith.extui %0 : i1 to i32
    %c0_i32_0 = arith.constant 0 : i32
    %2 = arith.cmpi ne, %1, %c0_i32_0 : i32
    scf.if %2 {
      %cst_10 = arith.constant 0.000000e+00 : f32
      %12 = vector.broadcast %cst_10 : f32 to vector<8x32xf32>
      %c0_11 = arith.constant 0 : index
      %c0_12 = arith.constant 0 : index
      %13 = vector.load %arg8[%c0_11, %c0_12] : memref<8x32xf32, #tpu.memory_space<vmem>>, vector<8x32xf32>
      tpu.vector_store %arg8[%c0_11, %c0_12], %12 {strides = array<i32>} : memref<8x32xf32, #tpu.memory_space<vmem>>, vector<8x32xf32>,
    } else {
    }
    %c0 = arith.constant 0 : index
    %c0_1 = arith.constant 0 : index
    %3 = vector.load %arg8[%c0, %c0_1] : memref<8x32xf32, #tpu.memory_space<vmem>>, vector<8x32xf32>
    %c0_2 = arith.constant 0 : index
    %c0_3 = arith.constant 0 : index
    %4 = vector.load %arg2[%c0_2, %c0_3] : memref<8x32xf32, #tpu.memory_space<vmem>>, vector<8x32xf32>
    %c0_4 = arith.constant 0 : index
    %c0_5 = arith.constant 0 : index
    %5 = vector.load %arg3[%c0_4, %c0_5] : memref<32x32xf32, #tpu.memory_space<vmem>>, vector<32x32xf32>
    %cst = arith.constant dense<0.000000e+00> : vector<8x32xf32>
    %6 = tpu.matmul %4, %5, %cst {dimension_numbers = #tpu.dot_dimension_numbers<[1], [0], [0], [1], [0, 0, 1, 1], [], []>} : vector<8x32xf32>, vector<32x32xf32>, vector<8x32xf32> -> vector<8x32xf32>
    %7 = arith.addf %3, %6 : vector<8x32xf32>
    %c0_6 = arith.constant 0 : index
    %c0_7 = arith.constant 0 : index
    %8 = vector.load %arg8[%c0_6, %c0_7] : memref<8x32xf32, #tpu.memory_space<vmem>>, vector<8x32xf32>
    tpu.vector_store %arg8[%c0_6, %c0_7], %7 {strides = array<i32>} : memref<8x32xf32, #tpu.memory_space<vmem>>, vector<8x32xf32>,
    %c0_i32_8 = arith.constant 0 : i32
    %9 = arith.cmpi eq, %arg1, %c0_i32_8 : i32
    %10 = arith.extui %9 : i1 to i32
    %c0_i32_9 = arith.constant 0 : i32
    %11 = arith.cmpi ne, %10, %c0_i32_9 : i32
    scf.if %11 {
      %c0_10 = arith.constant 0 : index
      %c0_11 = arith.constant 0 : index
      %12 = vector.load %arg8[%c0_10, %c0_11] : memref<8x32xf32, #tpu.memory_space<vmem>>, vector<8x32xf32>
      %c0_12 = arith.constant 0 : index
      %c0_13 = arith.constant 0 : index
      %13 = vector.load %arg4[%c0_12, %c0_13] : memref<1x32xf32, #tpu.memory_space<vmem>>, vector<1x32xf32>
      %14 = vector.broadcast %13 : vector<1x32xf32> to vector<8x32xf32>
      %15 = arith.addf %12, %14 : vector<8x32xf32>
      %16 = math.tanh %15 : vector<8x32xf32>
      %c0_14 = arith.constant 0 : index
      %c0_15 = arith.constant 0 : index
      %17 = vector.load %arg5[%c0_14, %c0_15] : memref<32x128xf32, #tpu.memory_space<vmem>>, vector<32x128xf32>
      %cst_16 = arith.constant dense<0.000000e+00> : vector<8x128xf32>
      %18 = tpu.matmul %16, %17, %cst_16 {dimension_numbers = #tpu.dot_dimension_numbers<[1], [0], [0], [1], [0, 0, 1, 1], [], []>} : vector<8x32xf32>, vector<32x128xf32>, vector<8x128xf32> -> vector<8x128xf32>
      %c0_17 = arith.constant 0 : index
      %c0_18 = arith.constant 0 : index
      %19 = vector.load %arg6[%c0_17, %c0_18] : memref<1x128xf32, #tpu.memory_space<vmem>>, vector<1x128xf32>
      %20 = vector.broadcast %19 : vector<1x128xf32> to vector<8x128xf32>
      %21 = arith.addf %18, %20 : vector<8x128xf32>
      %c0_19 = arith.constant 0 : index
      %c0_20 = arith.constant 0 : index
      %22 = vector.load %arg7[%c0_19, %c0_20] : memref<8x128xf32, #tpu.memory_space<vmem>>, vector<8x128xf32>
      tpu.vector_store %arg7[%c0_19, %c0_20], %21 {strides = array<i32>} : memref<8x128xf32, #tpu.memory_space<vmem>>, vector<8x128xf32>,
    } else {
    }
    return
  }
  func.func @transform_0(%arg0: i32, %arg1: i32) -> (i32, i32) {
    %c0_i32 = arith.constant 0 : i32
    return %arg0, %arg1 : i32, i32
  }
  func.func @transform_1(%arg0: i32, %arg1: i32) -> (i32, i32) {
    %c0_i32 = arith.constant 0 : i32
    %c0_i32_0 = arith.constant 0 : i32
    return %arg1, %c0_i32 : i32, i32
  }
  func.func @transform_2(%arg0: i32, %arg1: i32) -> (i32, i32) {
    %c0_i32 = arith.constant 0 : i32
    %c0_i32_0 = arith.constant 0 : i32
    %c0_i32_1 = arith.constant 0 : i32
    return %c0_i32, %c0_i32_0 : i32, i32
  }
  func.func @transform_3(%arg0: i32, %arg1: i32) -> (i32, i32) {
    %c0_i32 = arith.constant 0 : i32
    %c0_i32_0 = arith.constant 0 : i32
    %c0_i32_1 = arith.constant 0 : i32
    return %c0_i32, %c0_i32_0 : i32, i32
  }
  func.func @transform_4(%arg0: i32, %arg1: i32) -> (i32, i32) {
    %c0_i32 = arith.constant 0 : i32
    %c0_i32_0 = arith.constant 0 : i32
    %c0_i32_1 = arith.constant 0 : i32
    return %c0_i32, %c0_i32_0 : i32, i32
  }
  func.func @transform_5(%arg0: i32, %arg1: i32) -> (i32, i32) {
    %c0_i32 = arith.constant 0 : i32
    %c0_i32_0 = arith.constant 0 : i32
    return %arg0, %c0_i32 : i32, i32
  }
}

</mosaic_0001>

<llo_original>
// kernel: tpu_custom_call.1
$region0: #{tpu_custom_call.1}
  #allocation0 [shape = 'u32[]', space=smem, size = 0x4, offset = 0x4, fixed_abs, tag = 'smem constant byte address 0x4 - core index']
  #allocation1 [shape = 'u32[144,128]{1,0:T(1,128)}', space=vmem, size = 0x12000, scoped, tag = 'internal scratch']
  #allocation2 [shape = 'f32[8,32]{1,0:T(8,128)}', space=vmem, size = 0x1000, scoped, tag = 'scratch operand']
  %s0 = inlined_call_operand.hbm [shape: f32[8,32], index: 0, kind: input, shape index: {}]
  %s1 = inlined_call_operand.hbm [shape: f32[32,32], index: 1, kind: input, shape index: {}]
  %s2 = inlined_call_operand.vmem [shape: f32[1,32], index: 2, kind: input, shape index: {}]
  %s3 = inlined_call_operand.hbm [shape: f32[32,128], index: 3, kind: input, shape index: {}]
  %s4 = inlined_call_operand.vmem [shape: f32[1,128], index: 4, kind: input, shape index: {}]
  %s5 = inlined_call_operand.hbm [shape: f32[8,128], index: 5, kind: output, shape index: {}]
  %s6 = sld [smem:[#allocation0]]
  $region50: #{tpu_custom_call.1} parent=0
    _
  %s8 = ssub.s32 1, %s6
  %s9 = scalar_select 0, %s8, %s6
  $region1: #{tpu_custom_call.1} parent=0
    #allocation3 [shape = 'u8[4096]{0}', space=vmem, size = 0x1000, scoped, tag = 'input window, operand 0, single buffered']
    #allocation4 [shape = 's32[1]{0}', space=sflag, size = 0x4, scoped, tag = 'scoped memory for tpu_custom_call.1']
    #allocation5 [shape = 's32[1]{0}', space=sflag, size = 0x4, scoped, tag = 'scoped memory for tpu_custom_call.1']
    #allocation6 [shape = 'u8[16384]{0}', space=vmem, size = 0x4000, scoped, tag = 'input window, operand 1, single buffered']
    #allocation7 [shape = 's32[1]{0}', space=sflag, size = 0x4, scoped, tag = 'scoped memory for tpu_custom_call.1']
    #allocation8 [shape = 'u8[16384]{0}', space=vmem, size = 0x4000, scoped, tag = 'input window, operand 3, single buffered']
    #allocation9 [shape = 'u8[4096]{0}', space=vmem, size = 0x1000, scoped, tag = 'output window, operand 0, single buffered']
    %10 = vsyncpa [#allocation4], 0
    %11 = vsyncpa [#allocation7], 0
    %12 = vsyncpa [#allocation5], 0
    // Predicated region
    $region2: #{tpu_custom_call.1} parent=1 // pred_check
      _
    $region3: #{tpu_custom_call.1} parent=1 // pred_check_branch
      %14 = sbr.rel (0) target = $region5
    $region4: #{tpu_custom_call.1} parent=1 // pred_region
      %s16 = ssub.s32 128, 128
      %17 = vsyncadd [#allocation4], %s16
      %s19 = sshll.u32 [#allocation3], 4
      %s20 = int_to_ptr.vmem [resolvable:$true] %s19
      %22 = dma.hbm_to_vmem [thread:$0]  %s0, 128, %s20, [#allocation4]
    $region5: #{tpu_custom_call.1} parent=1 // pred_fallthru
      _
    // Predicated region
    $region6: #{tpu_custom_call.1} parent=1 // pred_check
      _
    $region7: #{tpu_custom_call.1} parent=1 // pred_check_branch
      %24 = sbr.rel (0) target = $region9
    $region8: #{tpu_custom_call.1} parent=1 // pred_region
      %s26 = ssub.s32 512, 512
      %27 = vsyncadd [#allocation7], %s26
      %s28 = sshll.u32 [#allocation6], 4
      %s29 = int_to_ptr.vmem [resolvable:$true] %s28
      %34 = dma.hbm_to_vmem [thread:$0]  %s1, 512, %s29, [#allocation7], 128, 128, 8
    $region9: #{tpu_custom_call.1} parent=1 // pred_fallthru
      _
    // Predicated region
    $region10: #{tpu_custom_call.1} parent=1 // pred_check
      _
    $region11: #{tpu_custom_call.1} parent=1 // pred_check_branch
      %36 = sbr.rel (0) target = $region13
    $region12: #{tpu_custom_call.1} parent=1 // pred_region
      _
    $region13: #{tpu_custom_call.1} parent=1 // pred_fallthru
      _
    // Predicated region
    $region14: #{tpu_custom_call.1} parent=1 // pred_check
      _
    $region15: #{tpu_custom_call.1} parent=1 // pred_check_branch
      %38 = sbr.rel (0) target = $region17
    $region16: #{tpu_custom_call.1} parent=1 // pred_region
      %s40 = ssub.s32 512, 512
      %41 = vsyncadd [#allocation7], %s40
      %s42 = sshll.u32 [#allocation8], 4
      %s43 = int_to_ptr.vmem [resolvable:$true] %s42
      %48 = dma.hbm_to_vmem [thread:$0]  %s3, 512, %s43, [#allocation7], 128, 128, 8
    $region17: #{tpu_custom_call.1} parent=1 // pred_fallthru
      _
    // Predicated region
    $region18: #{tpu_custom_call.1} parent=1 // pred_check
      _
    $region19: #{tpu_custom_call.1} parent=1 // pred_check_branch
      %50 = sbr.rel (0) target = $region21
    $region20: #{tpu_custom_call.1} parent=1 // pred_region
      _
    $region21: #{tpu_custom_call.1} parent=1 // pred_fallthru
      _
    // Predicated region
    $region22: #{tpu_custom_call.1} parent=1 // pred_check
      _
    $region23: #{tpu_custom_call.1} parent=1 // pred_check_branch
      %52 = sbr.rel (0) target = $region25
    $region24: #{tpu_custom_call.1} parent=1 // pred_region
      %53 = dma.done [#allocation4], 128
    $region25: #{tpu_custom_call.1} parent=1 // pred_fallthru
      _
    // Predicated region
    $region26: #{tpu_custom_call.1} parent=1 // pred_check
      _
    $region27: #{tpu_custom_call.1} parent=1 // pred_check_branch
      %55 = sbr.rel (0) target = $region29
    $region28: #{tpu_custom_call.1} parent=1 // pred_region
      %56 = dma.done [#allocation7], 512
    $region29: #{tpu_custom_call.1} parent=1 // pred_fallthru
      _
    // Predicated region
    $region30: #{tpu_custom_call.1} parent=1 // pred_check
      _
    $region31: #{tpu_custom_call.1} parent=1 // pred_check_branch
      %58 = sbr.rel (0) target = $region33
    $region32: #{tpu_custom_call.1} parent=1 // pred_region
      %59 = dma.done [#allocation7], 512
    $region33: #{tpu_custom_call.1} parent=1 // pred_fallthru
      _
    %p60 = scmp.eq.s32.totalorder 0, 0
    // Predicated region
    $region34: #{tpu_custom_call.1} parent=1 // pred_check
      %p61 = pneg %p60
    $region35: #{tpu_custom_call.1} parent=1 // pred_check_branch
      %63 = sbr.rel (%p61) target = $region37
    $region36: #{tpu_custom_call.1} parent=1 // pred_region
      %vm64 = vcmask 261120
      %65 = vst.msk [vmem:[#allocation2] sm:$0xff] %vm64, 0.0
    $region37: #{tpu_custom_call.1} parent=1 // pred_fallthru
      _
    %v66 = vld [vmem:[#allocation2] sm:$0xff]
    %v67 = vld [vmem:[#allocation3] sm:$0xff]
    %v68 = vld [vmem:[#allocation6] sm:$0xff]
    %v69 = vld [vmem:[#allocation6 + $0x8] sm:$0xff]
    %v70 = vld [vmem:[#allocation6 + $0x10] sm:$0xff]
    %v71 = vld [vmem:[#allocation6 + $0x18] sm:$0xff]
    %vm72 = vcmask 261120
    %v74 = vsel %vm72, %v67, 0
    %76 = vmatprep.subr.mxu0 0.0
    %77 = vmatpush1.msra.mxu0 0.0
    %78 = vmatprep.subr.mxu0 0.0
    %79 = vmatpush1.msra.mxu0 0.0
    %80 = vmatprep.subr.mxu0 0.0
    %81 = vmatpush1.msra.mxu0 0.0
    %82 = vmatprep.subr.mxu0 0.0
    %83 = vmatpush1.msra.mxu0 0.0
    %84 = vmatprep.subr.mxu0 0.0
    %85 = vmatpush1.msra.mxu0 0.0
    %86 = vmatprep.subr.mxu0 0.0
    %87 = vmatpush1.msra.mxu0 0.0
    %88 = vmatprep.subr.mxu0 0.0
    %89 = vmatpush1.msra.mxu0 0.0
    %90 = vmatprep.subr.mxu0 0.0
    %91 = vmatpush1.msra.mxu0 0.0
    %92 = vmatprep.subr.mxu0 0.0
    %93 = vmatpush1.msra.mxu0 0.0
    %94 = vmatprep.subr.mxu0 0.0
    %95 = vmatpush1.msra.mxu0 0.0
    %96 = vmatprep.subr.mxu0 0.0
    %97 = vmatpush1.msra.mxu0 0.0
    %98 = vmatprep.subr.mxu0 0.0
    %99 = vmatpush1.msra.mxu0 0.0
    %100 = vmatprep.subr.mxu0 0.0
    %101 = vmatpush1.msra.mxu0 %v71
    %102 = vmatprep.subr.mxu0 0.0
    %103 = vmatpush1.msra.mxu0 %v70
    %104 = vmatprep.subr.mxu0 0.0
    %105 = vmatpush1.msra.mxu0 %v69
    %106 = vmatprep.subr.mxu0 0.0
    %107 = vmatpush1.msra.mxu0 %v68
    %108 = vmatprep.subr.mxu0 0.0
    %109 = vmatpush2.msra.mxu0 0.0
    %110 = vmatprep.subr.mxu0 0.0
    %111 = vmatpush2.msra.mxu0 0.0
    %112 = vmatprep.subr.mxu0 0.0
    %113 = vmatpush2.msra.mxu0 0.0
    %114 = vmatprep.subr.mxu0 0.0
    %115 = vmatpush2.msra.mxu0 0.0
    %116 = vmatprep.subr.mxu0 0.0
    %117 = vmatpush2.msra.mxu0 0.0
    %118 = vmatprep.subr.mxu0 0.0
    %119 = vmatpush2.msra.mxu0 0.0
    %120 = vmatprep.subr.mxu0 0.0
    %121 = vmatpush2.msra.mxu0 0.0
    %122 = vmatprep.subr.mxu0 0.0
    %123 = vmatpush2.msra.mxu0 0.0
    %124 = vmatprep.subr.mxu0 0.0
    %125 = vmatpush2.msra.mxu0 0.0
    %126 = vmatprep.subr.mxu0 0.0
    %127 = vmatpush2.msra.mxu0 0.0
    %128 = vmatprep.subr.mxu0 0.0
    %129 = vmatpush2.msra.mxu0 0.0
    %130 = vmatprep.subr.mxu0 0.0
    %131 = vmatpush2.msra.mxu0 0.0
    %132 = vmatprep.subr.mxu0 0.0
    %133 = vmatpush2.msra.mxu0 0.0
    %134 = vmatprep.subr.mxu0 0.0
    %135 = vmatpush2.msra.mxu0 0.0
    %136 = vmatprep.subr.mxu0 0.0
    %137 = vmatpush2.msra.mxu0 0.0
    %138 = vmatprep.subr.mxu0 0.0
    %139 = vmatpush2.msra.mxu0 0.0
    %140 = vmatprep.mubr.f32.mxu0 0.0
    %141 = vmatmul.mubr.f32.gmra.mxu0 %v74
    %v142 = vpop.f32.mrf.mxu0
    %v143 = vadd.f32 0.0, %v142
    %v144 = vpop.f32.mrf.mxu0
    %145 = vdwg.mxu0
    %v146 = vadd.f32 %v66, %v143
    %147 = vst.msk [vmem:[#allocation2] sm:$0xff] %vm72, %v146
    // Predicated region
    $region38: #{tpu_custom_call.1} parent=1 // pred_check
      %p148 = pneg %p60
    $region39: #{tpu_custom_call.1} parent=1 // pred_check_branch
      %150 = sbr.rel (%p148) target = $region41
    $region40: #{tpu_custom_call.1} parent=1 // pred_region
      %v151 = vld [vmem:[#allocation2] sm:$0xff]
      %v152 = vld [vmem:[%s2] sm:$0x1]
      %v154 = vlaneseq
      %v155 = vshrl.u32 %v154, 7
      %v156 = vsub.s32 0, %v155
      %v157 = vrot.slane %v152, %v156
      %v159 = vadd.f32 %v151, %v157
      %v160 = vtanh.pop %v159
      %v161 = vld [vmem:[#allocation8] sm:$0xff]
      %v162 = vld [vmem:[#allocation8 + $0x8] sm:$0xff]
      %v163 = vld [vmem:[#allocation8 + $0x10] sm:$0xff]
      %v164 = vld [vmem:[#allocation8 + $0x18] sm:$0xff]
      %v165 = vld [vmem:[%s4] sm:$0x1]
      %v167 = vlaneseq
      %v168 = vshrl.u32 %v167, 7
      %v169 = vsub.s32 0, %v168
      %v170 = vrot.slane %v165, %v169
      %v173 = vsel %vm72, %v160, 0
      %175 = vmatprep.subr.mxu0 0.0
      %176 = vmatpush1.msra.mxu0 0.0
      %177 = vmatprep.subr.mxu0 0.0
      %178 = vmatpush1.msra.mxu0 0.0
      %179 = vmatprep.subr.mxu0 0.0
      %180 = vmatpush1.msra.mxu0 0.0
      %181 = vmatprep.subr.mxu0 0.0
      %182 = vmatpush1.msra.mxu0 0.0
      %183 = vmatprep.subr.mxu0 0.0
      %184 = vmatpush1.msra.mxu0 0.0
      %185 = vmatprep.subr.mxu0 0.0
      %186 = vmatpush1.msra.mxu0 0.0
      %187 = vmatprep.subr.mxu0 0.0
      %188 = vmatpush1.msra.mxu0 0.0
      %189 = vmatprep.subr.mxu0 0.0
      %190 = vmatpush1.msra.mxu0 0.0
      %191 = vmatprep.subr.mxu0 0.0
      %192 = vmatpush1.msra.mxu0 0.0
      %193 = vmatprep.subr.mxu0 0.0
      %194 = vmatpush1.msra.mxu0 0.0
      %195 = vmatprep.subr.mxu0 0.0
      %196 = vmatpush1.msra.mxu0 0.0
      %197 = vmatprep.subr.mxu0 0.0
      %198 = vmatpush1.msra.mxu0 0.0
      %199 = vmatprep.subr.mxu0 0.0
      %200 = vmatpush1.msra.mxu0 %v164
      %201 = vmatprep.subr.mxu0 0.0
      %202 = vmatpush1.msra.mxu0 %v163
      %203 = vmatprep.subr.mxu0 0.0
      %204 = vmatpush1.msra.mxu0 %v162
      %205 = vmatprep.subr.mxu0 0.0
      %206 = vmatpush1.msra.mxu0 %v161
      %207 = vmatprep.subr.mxu0 0.0
      %208 = vmatpush2.msra.mxu0 0.0
      %209 = vmatprep.subr.mxu0 0.0
      %210 = vmatpush2.msra.mxu0 0.0
      %211 = vmatprep.subr.mxu0 0.0
      %212 = vmatpush2.msra.mxu0 0.0
      %213 = vmatprep.subr.mxu0 0.0
      %214 = vmatpush2.msra.mxu0 0.0
      %215 = vmatprep.subr.mxu0 0.0
      %216 = vmatpush2.msra.mxu0 0.0
      %217 = vmatprep.subr.mxu0 0.0
      %218 = vmatpush2.msra.mxu0 0.0
      %219 = vmatprep.subr.mxu0 0.0
      %220 = vmatpush2.msra.mxu0 0.0
      %221 = vmatprep.subr.mxu0 0.0
      %222 = vmatpush2.msra.mxu0 0.0
      %223 = vmatprep.subr.mxu0 0.0
      %224 = vmatpush2.msra.mxu0 0.0
      %225 = vmatprep.subr.mxu0 0.0
      %226 = vmatpush2.msra.mxu0 0.0
      %227 = vmatprep.subr.mxu0 0.0
      %228 = vmatpush2.msra.mxu0 0.0
      %229 = vmatprep.subr.mxu0 0.0
      %230 = vmatpush2.msra.mxu0 0.0
      %231 = vmatprep.subr.mxu0 0.0
      %232 = vmatpush2.msra.mxu0 0.0
      %233 = vmatprep.subr.mxu0 0.0
      %234 = vmatpush2.msra.mxu0 0.0
      %235 = vmatprep.subr.mxu0 0.0
      %236 = vmatpush2.msra.mxu0 0.0
      %237 = vmatprep.subr.mxu0 0.0
      %238 = vmatpush2.msra.mxu0 0.0
      %239 = vmatprep.mubr.f32.mxu0 0.0
      %240 = vmatmul.mubr.f32.gmra.mxu0 %v173
      %v241 = vpop.f32.mrf.mxu0
      %v242 = vadd.f32 %v170, %v241
      %v243 = vpop.f32.mrf.mxu0
      %244 = vdwg.mxu0
      %245 = vst [vmem:[#allocation9] sm:$0xff] %v242
    $region41: #{tpu_custom_call.1} parent=1 // pred_fallthru
      _
    // Predicated region
    $region42: #{tpu_custom_call.1} parent=1 // pred_check
      _
    $region43: #{tpu_custom_call.1} parent=1 // pred_check_branch
      %247 = sbr.rel (0) target = $region45
    $region44: #{tpu_custom_call.1} parent=1 // pred_region
      %s249 = ssub.s32 128, 128
      %250 = vsyncadd [#allocation5], %s249
      %s252 = sshll.u32 [#allocation9], 4
      %s253 = int_to_ptr.vmem [resolvable:$true] %s252
      %255 = dma.vmem_to_hbm [thread:$0]  %s253, 128, %s5, [#allocation5]
    $region45: #{tpu_custom_call.1} parent=1 // pred_fallthru
      _
    // Predicated region
    $region46: #{tpu_custom_call.1} parent=1 // pred_check
      _
    $region47: #{tpu_custom_call.1} parent=1 // pred_check_branch
      %257 = sbr.rel (0) target = $region49
    $region48: #{tpu_custom_call.1} parent=1 // pred_region
      %258 = dma.done [#allocation5], 128
    $region49: #{tpu_custom_call.1} parent=1 // pred_fallthru
      _
    %259 = vsyncpa [#allocation4], 1
    %260 = vsyncpa [#allocation7], 1
    %261 = vsyncpa [#allocation5], 1

</llo_original>
